<compile_context>
chip_gen: v7x
topology: tpu7x:2x2x1
jax: 0.10.0
libtpu: 0.0.40
codegen_flags: <defaults>
</compile_context>

<pallas_src>
import numpy as np
import jax
import jax.numpy as jnp
from jax.experimental import pallas as pl
from jax.experimental.pallas import tpu as pltpu

# ---- module "config" (mirrors cfg defaults) ----------------------------------
NUM_FREQS = 6
D_IN = 3
FREQ_FACTOR = np.pi
INCLUDE_INPUT = True


# ---- kernel -------------------------------------------------------------------
def _posenc_kernel(r_ref, p_ref, sel_ref, x_ref, out_ref):
    """One batch-tile of the encoding, batch on the lane axis.

    r_ref:   (d_out, d_in) f32   R' = [I_dim (if include_input) ; freq-scale rows]
    p_ref:   (d_out, 1)    f32   phase per output row (0 or pi/2; 0 for input rows)
    sel_ref: (d_out, 1)    f32   1.0 -> passthrough row (copy pre), 0.0 -> sin row
    x_ref:   (d_in, TB)          input tile
    out_ref: (d_out, TB)         output tile
    """
    x = x_ref[...].astype(jnp.float32)                         # (d_in, TB)
    # Replicate + frequency-scale in one tiny MXU matmul, full f32 precision.
    pre = jnp.dot(r_ref[...], x,
                  precision=jax.lax.Precision.HIGHEST,
                  preferred_element_type=jnp.float32)           # (d_out, TB)
    emb = jnp.sin(p_ref[...] + pre)                             # VPU add + sin
    # Single aligned full-tile store; per-row select keeps input rows verbatim.
    out_ref[...] = jnp.where(sel_ref[...] > 0.5, pre, emb).astype(out_ref.dtype)


# ---- helpers ------------------------------------------------------------------
def _round_up(n, m):
    return -(-n // m) * m


def _choose_tb(b_pad, cap=32768):
    """Largest multiple-of-128 divisor of b_pad that (a) stays within ~13 MiB of
    double-buffered tiles (fits the 16 MiB default scoped VMEM on v5e) and
    (b) leaves >= 2 grid steps when possible (megacore sharding on v7x)."""
    assert b_pad % 128 == 0
    upper = min(cap, b_pad)
    if b_pad >= 256:
        upper = min(upper, b_pad // 2)
    upper = max(128, (upper // 128) * 128)
    tb = upper
    while b_pad % tb != 0:
        tb -= 128
    return tb


def _make_tables(num_freqs, d_in, freq_factor, include_input):
    """Constant tables R' (d_out, d_in), phase column, passthrough-select column."""
    freqs = freq_factor * 2.0 ** np.arange(num_freqs)           # (F,)
    d_emb = 2 * num_freqs * d_in
    e = np.arange(d_emb)
    j = e // d_in                                               # 0..2F-1
    d = e % d_in
    r_emb = np.zeros((d_emb, d_in), dtype=np.float32)
    r_emb[e, d] = freqs[j // 2]
    p_emb = np.where(j % 2 == 1, np.pi * 0.5, 0.0).astype(np.float32)

    if include_input:
        r_mat = np.concatenate([np.eye(d_in, dtype=np.float32), r_emb], axis=0)
        p_col = np.concatenate([np.zeros(d_in, np.float32), p_emb])
        sel = np.concatenate([np.ones(d_in, np.float32),
                              np.zeros(d_emb, np.float32)])
    else:
        r_mat, p_col, sel = r_emb, p_emb, np.zeros(d_emb, np.float32)

    d_out = r_mat.shape[0]
    return (r_mat, p_col.reshape(d_out, 1).astype(np.float32),
            sel.reshape(d_out, 1).astype(np.float32), d_out)


# ---- fast path: (d_in, B) -> (d_out, B), batch on lanes -------------------------
def positional_encoding_t(x_t,
                          num_freqs=NUM_FREQS,
                          freq_factor=FREQ_FACTOR,
                          include_input=INCLUDE_INPUT,
                          out_dtype=None,
                          tb=None):
    assert x_t.ndim == 2
    d_in, B = x_t.shape
    out_dtype = x_t.dtype if out_dtype is None else out_dtype

    # Pad batch (lanes) to a multiple of 128 so every block is lane-dense and
    # double-buffered; slice the padding back off at the end.
    B_pad = _round_up(max(B, 1), 128)
    if B_pad != B:
        x_t = jnp.pad(x_t, ((0, 0), (0, B_pad - B)))

    tb = _choose_tb(B_pad) if tb is None else tb
    assert B_pad % tb == 0 and tb % 128 == 0, "tb must be a multiple of 128 dividing padded B"

    r_np, p_np, sel_np, d_out = _make_tables(num_freqs, d_in, freq_factor,
                                             include_input)
    r_mat = jnp.asarray(r_np)
    p_col = jnp.asarray(p_np)
    sel_col = jnp.asarray(sel_np)

    # VMEM budget: double-buffered input + output tiles (+ tiny constants).
    in_isz = jnp.dtype(x_t.dtype).itemsize
    out_isz = jnp.dtype(out_dtype).itemsize
    tile_bytes = 2 * (_round_up(d_in, 8) * tb * in_isz
                      + _round_up(d_out, 8) * tb * out_isz)
    vmem_limit = int(min(max(2 * tile_bytes, 16 * 1024 * 1024), 64 * 1024 * 1024))

    bytes_accessed = int((d_in * in_isz + d_out * out_isz) * B_pad)
    cost = pl.CostEstimate(flops=int(2 * d_out * d_in * B_pad + 2 * d_out * B_pad),
                           transcendentals=int(d_out * B_pad),
                           bytes_accessed=bytes_accessed)

    out = pl.pallas_call(
        _posenc_kernel,
        out_shape=jax.ShapeDtypeStruct((d_out, B_pad), out_dtype),
        grid=(B_pad // tb,),
        in_specs=[
            pl.BlockSpec((d_out, d_in), lambda i: (0, 0)),   # R'   (constant block)
            pl.BlockSpec((d_out, 1), lambda i: (0, 0)),      # phase column
            pl.BlockSpec((d_out, 1), lambda i: (0, 0)),      # passthrough select
            pl.BlockSpec((d_in, tb), lambda i: (0, i)),      # x tile
        ],
        out_specs=pl.BlockSpec((d_out, tb), lambda i: (0, i)),
        compiler_params=pltpu.CompilerParams(
            dimension_semantics=("parallel",),
            vmem_limit_bytes=vmem_limit),
        cost_estimate=cost,
    )(r_mat, p_col, sel_col, x_t)

    if B_pad != B:
        out = out[:, :B]
    return out


# ---- module-compatible interface: (B, d_in) -> (B, d_out) ------------------------
def positional_encoding(x, **kwargs):
    """Compatibility wrapper. The two boundary transposes roughly triple HBM
    traffic for this memory-bound op — callers that can consume the (d_out, B)
    layout should call positional_encoding_t directly (or fuse downstream)."""
    return positional_encoding_t(x.T, **kwargs).T


# ---- pure-numpy reference (mirrors the PyTorch forward) --------------------------
def _ref_posenc(x_np, num_freqs=NUM_FREQS, freq_factor=FREQ_FACTOR,
                include_input=INCLUDE_INPUT):
    freqs = freq_factor * 2.0 ** np.arange(num_freqs)
    fr = np.repeat(freqs, 2).reshape(1, -1, 1)                 # (1, 2F, 1)
    ph = np.zeros(2 * num_freqs)
    ph[1::2] = np.pi * 0.5
    ph = ph.reshape(1, -1, 1)                                  # (1, 2F, 1)
    embed = np.sin(ph + x_np[:, None, :].astype(np.float64) * fr)   # (B, 2F, d_in)
    embed = embed.reshape(x_np.shape[0], -1)
    if include_input:
        embed = np.concatenate([x_np, embed], axis=-1)
    return embed.astype(np.float32)


if __name__ == "__main__":
    key = jax.random.PRNGKey(0)
    k1, k2, k3 = jax.random.split(key, 3)

    D_OUT = 2 * NUM_FREQS * D_IN + D_IN

    # 1) Module interface (batch, d_in) at a tiny batch.
    B = 8
    x = jax.random.normal(k1, (B, D_IN), dtype=jnp.float32)
    out = jax.block_until_ready(positional_encoding(x))
    assert out.shape == (B, D_OUT), out.shape
    np.testing.assert_allclose(np.asarray(out), _ref_posenc(np.asarray(x)),
                               rtol=1e-3, atol=1e-3)

    # 2) include_input=False branch.
    out_ni = jax.block_until_ready(positional_encoding(x, include_input=False))
    assert out_ni.shape == (B, 2 * NUM_FREQS * D_IN), out_ni.shape
    np.testing.assert_allclose(np.asarray(out_ni),
                               _ref_posenc(np.asarray(x), include_input=False),
                               rtol=1e-3, atol=1e-3)

    # 3) Lane-dense fast path, multi-step grid (B=1024 -> tb=512, 2 parallel steps).
    B2 = 1024
    x2 = jax.random.normal(k2, (D_IN, B2), dtype=jnp.float32)
    out2 = jax.block_until_ready(positional_encoding_t(x2))
    assert out2.shape == (D_OUT, B2), out2.shape
    np.testing.assert_allclose(np.asarray(out2),
                               _ref_posenc(np.asarray(x2).T).T,
                               rtol=1e-3, atol=1e-3)

    # 4) Ragged batch (pads 300 -> 384, tb=128, 3 steps) with bf16 output path.
    B3 = 300
    x3 = jax.random.normal(k3, (D_IN, B3), dtype=jnp.float32)
    out3 = jax.block_until_ready(positional_encoding_t(x3, out_dtype=jnp.bfloat16))
    assert out3.shape == (D_OUT, B3), out3.shape
    np.testing.assert_allclose(np.asarray(out3, dtype=np.float32),
                               _ref_posenc(np.asarray(x3).T).T,
                               rtol=2e-2, atol=3e-2)

    print("KERNEL_OK")
</pallas_src>

<mosaic_0001>
module attributes {stable_mosaic.version = 11 : i64} {
  func.func @_posenc_kernel(%arg0: i32, %arg1: memref<39x3xf32, #tpu.memory_space<vmem>>, %arg2: memref<39x1xf32, #tpu.memory_space<vmem>>, %arg3: memref<39x1xf32, #tpu.memory_space<vmem>>, %arg4: memref<3x128xf32, #tpu.memory_space<vmem>>, %arg5: memref<39x128xf32, #tpu.memory_space<vmem>>) attributes {dimension_semantics = [#tpu.dimension_semantics<parallel>], iteration_bounds = array<i64: 1>, scalar_prefetch = 0 : i64, scratch_operands = 0 : i64, tpu.core_type = #tpu.core_type<tc>, window_params = [{pipeline_mode = #tpu.pipeline_mode<synchronous>, transform_indices = @transform_0, window_bounds = array<i64: 39, 3>}, {pipeline_mode = #tpu.pipeline_mode<synchronous>, transform_indices = @transform_1, window_bounds = array<i64: 39, 1>}, {pipeline_mode = #tpu.pipeline_mode<synchronous>, transform_indices = @transform_2, window_bounds = array<i64: 39, 1>}, {transform_indices = @transform_3, window_bounds = array<i64: 3, 128>}, {transform_indices = @transform_4, window_bounds = array<i64: 39, 128>}]} {
    %c0 = arith.constant 0 : index
    %c0_0 = arith.constant 0 : index
    %0 = vector.load %arg4[%c0, %c0_0] : memref<3x128xf32, #tpu.memory_space<vmem>>, vector<3x128xf32>
    %c0_1 = arith.constant 0 : index
    %c0_2 = arith.constant 0 : index
    %1 = vector.load %arg1[%c0_1, %c0_2] : memref<39x3xf32, #tpu.memory_space<vmem>>, vector<39x3xf32>
    %cst = arith.constant dense<0.000000e+00> : vector<39x128xf32>
    %2 = tpu.matmul %1, %0, %cst {dimension_numbers = #tpu.dot_dimension_numbers<[1], [0], [0], [1], [0, 0, 1, 1], [], []>, precision = #tpu.contract_precision<fp32>} : vector<39x3xf32>, vector<3x128xf32>, vector<39x128xf32> -> vector<39x128xf32>
    %c0_3 = arith.constant 0 : index
    %c0_4 = arith.constant 0 : index
    %3 = vector.load %arg2[%c0_3, %c0_4] : memref<39x1xf32, #tpu.memory_space<vmem>>, vector<39x1xf32>
    %4 = vector.broadcast %3 : vector<39x1xf32> to vector<39x128xf32>
    %5 = arith.addf %4, %2 : vector<39x128xf32>
    %6 = math.sin %5 : vector<39x128xf32>
    %c0_5 = arith.constant 0 : index
    %c0_6 = arith.constant 0 : index
    %7 = vector.load %arg3[%c0_5, %c0_6] : memref<39x1xf32, #tpu.memory_space<vmem>>, vector<39x1xf32>
    %cst_7 = arith.constant 5.000000e-01 : f32
    %8 = vector.broadcast %cst_7 : f32 to vector<39x1xf32>
    %9 = arith.cmpf ogt, %7, %8 : vector<39x1xf32>
    %10 = vector.shape_cast %9 : vector<39x1xi1> to vector<39x1xi1>
    %11 = vector.broadcast %10 : vector<39x1xi1> to vector<39x128xi1>
    %12 = arith.select %11, %2, %6 : vector<39x128xi1>, vector<39x128xf32>
    %c0_8 = arith.constant 0 : index
    %c0_9 = arith.constant 0 : index
    %13 = vector.load %arg5[%c0_8, %c0_9] : memref<39x128xf32, #tpu.memory_space<vmem>>, vector<39x128xf32>
    tpu.vector_store %arg5[%c0_8, %c0_9], %12 {strides = array<i32>} : memref<39x128xf32, #tpu.memory_space<vmem>>, vector<39x128xf32>,
    return
  }
  func.func @transform_0(%arg0: i32) -> (i32, i32) {
    %c0_i32 = arith.constant 0 : i32
    %c0_i32_0 = arith.constant 0 : i32
    %c0_i32_1 = arith.constant 0 : i32
    return %c0_i32, %c0_i32_0 : i32, i32
  }
  func.func @transform_1(%arg0: i32) -> (i32, i32) {
    %c0_i32 = arith.constant 0 : i32
    %c0_i32_0 = arith.constant 0 : i32
    %c0_i32_1 = arith.constant 0 : i32
    return %c0_i32, %c0_i32_0 : i32, i32
  }
  func.func @transform_2(%arg0: i32) -> (i32, i32) {
    %c0_i32 = arith.constant 0 : i32
    %c0_i32_0 = arith.constant 0 : i32
    %c0_i32_1 = arith.constant 0 : i32
    return %c0_i32, %c0_i32_0 : i32, i32
  }
  func.func @transform_3(%arg0: i32) -> (i32, i32) {
    %c0_i32 = arith.constant 0 : i32
    %c0_i32_0 = arith.constant 0 : i32
    return %c0_i32, %arg0 : i32, i32
  }
  func.func @transform_4(%arg0: i32) -> (i32, i32) {
    %c0_i32 = arith.constant 0 : i32
    %c0_i32_0 = arith.constant 0 : i32
    return %c0_i32, %arg0 : i32, i32
  }
}

</mosaic_0001>

<llo_original>
// kernel: tpu_custom_call.1
$region0: #{tpu_custom_call.1}
  #allocation0 [shape = 'u32[]', space=smem, size = 0x4, offset = 0x4, fixed_abs, tag = 'smem constant byte address 0x4 - core index']
  #allocation1 [shape = 'u32[144,128]{1,0:T(1,128)}', space=vmem, size = 0x12000, scoped, tag = 'internal scratch']
  %s0 = inlined_call_operand.vmem [shape: f32[39,3], index: 0, kind: input, shape index: {}]
  %s1 = inlined_call_operand.vmem [shape: f32[39,1], index: 1, kind: input, shape index: {}]
  %s2 = inlined_call_operand.vmem [shape: f32[39,1], index: 2, kind: input, shape index: {}]
  %s3 = inlined_call_operand.vmem [shape: f32[3,128], index: 3, kind: input, shape index: {}]
  %s4 = inlined_call_operand.hbm [shape: f32[39,128], index: 4, kind: output, shape index: {}]
  %s5 = sld [smem:[#allocation0]]
  $region26: #{tpu_custom_call.1} parent=0
    _
  %s7 = ssub.s32 1, %s5
  %s8 = scalar_select 0, %s7, %s5
  $region1: #{tpu_custom_call.1} parent=0
    #allocation2 [shape = 'u8[20480]{0}', space=vmem, size = 0x5000, scoped, tag = 'output window, operand 0, single buffered']
    #allocation3 [shape = 's32[1]{0}', space=sflag, size = 0x4, scoped, tag = 'scoped memory for tpu_custom_call.1']
    %9 = vsyncpa [#allocation3], 0
    // Predicated region
    $region2: #{tpu_custom_call.1} parent=1 // pred_check
      _
    $region3: #{tpu_custom_call.1} parent=1 // pred_check_branch
      %11 = sbr.rel (0) target = $region5
    $region4: #{tpu_custom_call.1} parent=1 // pred_region
      _
    $region5: #{tpu_custom_call.1} parent=1 // pred_fallthru
      _
    // Predicated region
    $region6: #{tpu_custom_call.1} parent=1 // pred_check
      _
    $region7: #{tpu_custom_call.1} parent=1 // pred_check_branch
      %13 = sbr.rel (0) target = $region9
    $region8: #{tpu_custom_call.1} parent=1 // pred_region
      _
    $region9: #{tpu_custom_call.1} parent=1 // pred_fallthru
      _
    // Predicated region
    $region10: #{tpu_custom_call.1} parent=1 // pred_check
      _
    $region11: #{tpu_custom_call.1} parent=1 // pred_check_branch
      %15 = sbr.rel (0) target = $region13
    $region12: #{tpu_custom_call.1} parent=1 // pred_region
      _
    $region13: #{tpu_custom_call.1} parent=1 // pred_fallthru
      _
    // Predicated region
    $region14: #{tpu_custom_call.1} parent=1 // pred_check
      _
    $region15: #{tpu_custom_call.1} parent=1 // pred_check_branch
      %17 = sbr.rel (0) target = $region17
    $region16: #{tpu_custom_call.1} parent=1 // pred_region
      _
    $region17: #{tpu_custom_call.1} parent=1 // pred_fallthru
      _
    %v18 = vld [vmem:[%s3] sm:$0x7]
    %v19 = vld [vmem:[%s0] sm:$0xff]
    %v20 = vld [vmem:[%s0 + $0x8] sm:$0xff]
    %v21 = vld [vmem:[%s0 + $0x10] sm:$0xff]
    %v22 = vld [vmem:[%s0 + $0x18] sm:$0xff]
    %v23 = vld [vmem:[%s0 + $0x20] sm:$0x7f]
    %vm24 = vcmask 23552
    %v26 = vsel %vm24, %v19, 0
    %v29 = vsel %vm24, %v20, 0
    %v32 = vsel %vm24, %v21, 0
    %v35 = vsel %vm24, %v22, 0
    %v38 = vsel %vm24, %v23, 0
    %vm40 = vcmask 1042432
    %v42 = vsel %vm40, %v18, 0
    %44 = vmatprep.subr.mxu0 0.0
    %v45 = vand.u32 %v42, 4294901760
    %46 = vmatpush1.msra.mxu0 %v45
    %47 = vmatprep.subr.mxu0 0.0
    %48 = vmatpush1.msra.mxu0 0.0
    %49 = vmatprep.subr.mxu0 0.0
    %50 = vmatpush1.msra.mxu0 0.0
    %51 = vmatprep.subr.mxu0 0.0
    %52 = vmatpush1.msra.mxu0 0.0
    %53 = vmatprep.subr.mxu0 0.0
    %54 = vmatpush1.msra.mxu0 0.0
    %55 = vmatprep.subr.mxu0 0.0
    %56 = vmatpush1.msra.mxu0 0.0
    %57 = vmatprep.subr.mxu0 0.0
    %58 = vmatpush1.msra.mxu0 0.0
    %59 = vmatprep.subr.mxu0 0.0
    %60 = vmatpush1.msra.mxu0 0.0
    %61 = vmatprep.subr.mxu0 0.0
    %62 = vmatpush1.msra.mxu0 0.0
    %63 = vmatprep.subr.mxu0 0.0
    %64 = vmatpush1.msra.mxu0 0.0
    %65 = vmatprep.subr.mxu0 0.0
    %66 = vmatpush1.msra.mxu0 0.0
    %67 = vmatprep.subr.mxu0 0.0
    %68 = vmatpush1.msra.mxu0 0.0
    %69 = vmatprep.subr.mxu0 0.0
    %70 = vmatpush1.msra.mxu0 0.0
    %71 = vmatprep.subr.mxu0 0.0
    %72 = vmatpush1.msra.mxu0 0.0
    %73 = vmatprep.subr.mxu0 0.0
    %74 = vmatpush1.msra.mxu0 0.0
    %75 = vmatprep.subr.mxu0 0.0
    %76 = vmatpush1.msra.mxu0 0.0
    %77 = vmatprep.subr.mxu0 0.0
    %78 = vmatpush1.msra.mxu0 0.0
    %79 = vmatprep.subr.mxu0 0.0
    %80 = vmatpush1.msra.mxu0 0.0
    %81 = vmatprep.subr.mxu0 0.0
    %82 = vmatpush1.msra.mxu0 0.0
    %83 = vmatprep.subr.mxu0 0.0
    %84 = vmatpush1.msra.mxu0 0.0
    %85 = vmatprep.subr.mxu0 0.0
    %86 = vmatpush1.msra.mxu0 0.0
    %87 = vmatprep.subr.mxu0 0.0
    %88 = vmatpush1.msra.mxu0 0.0
    %89 = vmatprep.subr.mxu0 0.0
    %90 = vmatpush1.msra.mxu0 0.0
    %91 = vmatprep.subr.mxu0 0.0
    %92 = vmatpush1.msra.mxu0 0.0
    %93 = vmatprep.subr.mxu0 0.0
    %94 = vmatpush1.msra.mxu0 0.0
    %95 = vmatprep.subr.mxu0 0.0
    %96 = vmatpush1.msra.mxu0 0.0
    %97 = vmatprep.subr.mxu0 0.0
    %98 = vmatpush1.msra.mxu0 0.0
    %99 = vmatprep.subr.mxu0 0.0
    %100 = vmatpush1.msra.mxu0 0.0
    %101 = vmatprep.subr.mxu0 0.0
    %102 = vmatpush1.msra.mxu0 0.0
    %103 = vmatprep.subr.mxu0 0.0
    %104 = vmatpush1.msra.mxu0 0.0
    %105 = vmatprep.subr.mxu0 0.0
    %106 = vmatpush1.msra.mxu0 0.0
    %107 = vmatprep.subr.mxu0 0.0
    %108 = vmatpush1.msra.mxu0 0.0
    %109 = vmatprep.mubr.f32.mxu0 0.0
    %v110 = vand.u32 %v26, 4294901760
    %v111 = vsub.f32 %v26, %v110
    %v112 = vand.u32 %v111, 4294901760
    %v113 = vsub.f32 %v111, %v112
    %v114 = vand.u32 %v113, 4294901760
    %115 = vmatmul.mubr.f32.gmra.mrb[0].mxu0 %v114
    %v116 = vpop.f32.mrb[0].mxu0
    %v117 = vadd.f32 0.0, %v116
    %v118 = vpop.f32.mrb[0].mxu0
    %119 = vmatprep.mubr.f32.mxu0 0.0
    %v120 = vand.u32 %v29, 4294901760
    %v121 = vsub.f32 %v29, %v120
    %v122 = vand.u32 %v121, 4294901760
    %v123 = vsub.f32 %v121, %v122
    %v124 = vand.u32 %v123, 4294901760
    %125 = vmatmul.mubr.f32.gmra.mrb[0].mxu0 %v124
    %v126 = vpop.f32.mrb[0].mxu0
    %v127 = vadd.f32 0.0, %v126
    %v128 = vpop.f32.mrb[0].mxu0
    %129 = vmatprep.mubr.f32.mxu0 0.0
    %v130 = vand.u32 %v32, 4294901760
    %v131 = vsub.f32 %v32, %v130
    %v132 = vand.u32 %v131, 4294901760
    %v133 = vsub.f32 %v131, %v132
    %v134 = vand.u32 %v133, 4294901760
    %135 = vmatmul.mubr.f32.gmra.mrb[0].mxu0 %v134
    %v136 = vpop.f32.mrb[0].mxu0
    %v137 = vadd.f32 0.0, %v136
    %v138 = vpop.f32.mrb[0].mxu0
    %139 = vmatprep.mubr.f32.mxu0 0.0
    %v140 = vand.u32 %v35, 4294901760
    %v141 = vsub.f32 %v35, %v140
    %v142 = vand.u32 %v141, 4294901760
    %v143 = vsub.f32 %v141, %v142
    %v144 = vand.u32 %v143, 4294901760
    %145 = vmatmul.mubr.f32.gmra.mrb[0].mxu0 %v144
    %v146 = vpop.f32.mrb[0].mxu0
    %v147 = vadd.f32 0.0, %v146
    %v148 = vpop.f32.mrb[0].mxu0
    %149 = vmatprep.mubr.f32.mxu0 0.0
    %v150 = vand.u32 %v38, 4294901760
    %v151 = vsub.f32 %v38, %v150
    %v152 = vand.u32 %v151, 4294901760
    %v153 = vsub.f32 %v151, %v152
    %v154 = vand.u32 %v153, 4294901760
    %155 = vmatmul.mubr.f32.gmra.mrb[0].mxu0 %v154
    %v156 = vpop.f32.mrb[0].mxu0
    %v157 = vadd.f32 0.0, %v156
    %v158 = vpop.f32.mrb[0].mxu0
    %159 = vdwg.mxu0
    %160 = vmatprep.subr.mxu0 0.0
    %v161 = vand.u32 %v42, 4294901760
    %v162 = vsub.f32 %v42, %v161
    %v163 = vand.u32 %v162, 4294901760
    %v164 = vsub.f32 %v162, %v163
    %v165 = vand.u32 %v164, 4294901760
    %166 = vmatpush1.msra.mxu0 %v165
    %167 = vmatprep.subr.mxu0 0.0
    %168 = vmatpush1.msra.mxu0 0.0
    %169 = vmatprep.subr.mxu0 0.0
    %170 = vmatpush1.msra.mxu0 0.0
    %171 = vmatprep.subr.mxu0 0.0
    %172 = vmatpush1.msra.mxu0 0.0
    %173 = vmatprep.subr.mxu0 0.0
    %174 = vmatpush1.msra.mxu0 0.0
    %175 = vmatprep.subr.mxu0 0.0
    %176 = vmatpush1.msra.mxu0 0.0
    %177 = vmatprep.subr.mxu0 0.0
    %178 = vmatpush1.msra.mxu0 0.0
    %179 = vmatprep.subr.mxu0 0.0
    %180 = vmatpush1.msra.mxu0 0.0
    %181 = vmatprep.subr.mxu0 0.0
    %182 = vmatpush1.msra.mxu0 0.0
    %183 = vmatprep.subr.mxu0 0.0
    %184 = vmatpush1.msra.mxu0 0.0
    %185 = vmatprep.subr.mxu0 0.0
    %186 = vmatpush1.msra.mxu0 0.0
    %187 = vmatprep.subr.mxu0 0.0
    %188 = vmatpush1.msra.mxu0 0.0
    %189 = vmatprep.subr.mxu0 0.0
    %190 = vmatpush1.msra.mxu0 0.0
    %191 = vmatprep.subr.mxu0 0.0
    %192 = vmatpush1.msra.mxu0 0.0
    %193 = vmatprep.subr.mxu0 0.0
    %194 = vmatpush1.msra.mxu0 0.0
    %195 = vmatprep.subr.mxu0 0.0
    %196 = vmatpush1.msra.mxu0 0.0
    %197 = vmatprep.subr.mxu0 0.0
    %198 = vmatpush1.msra.mxu0 0.0
    %199 = vmatprep.subr.mxu0 0.0
    %200 = vmatpush1.msra.mxu0 0.0
    %201 = vmatprep.subr.mxu0 0.0
    %202 = vmatpush1.msra.mxu0 0.0
    %203 = vmatprep.subr.mxu0 0.0
    %204 = vmatpush1.msra.mxu0 0.0
    %205 = vmatprep.subr.mxu0 0.0
    %206 = vmatpush1.msra.mxu0 0.0
    %207 = vmatprep.subr.mxu0 0.0
    %208 = vmatpush1.msra.mxu0 0.0
    %209 = vmatprep.subr.mxu0 0.0
    %210 = vmatpush1.msra.mxu0 0.0
    %211 = vmatprep.subr.mxu0 0.0
    %212 = vmatpush1.msra.mxu0 0.0
    %213 = vmatprep.subr.mxu0 0.0
    %214 = vmatpush1.msra.mxu0 0.0
    %215 = vmatprep.subr.mxu0 0.0
    %216 = vmatpush1.msra.mxu0 0.0
    %217 = vmatprep.subr.mxu0 0.0
    %218 = vmatpush1.msra.mxu0 0.0
    %219 = vmatprep.subr.mxu0 0.0
    %220 = vmatpush1.msra.mxu0 0.0
    %221 = vmatprep.subr.mxu0 0.0
    %222 = vmatpush1.msra.mxu0 0.0
    %223 = vmatprep.subr.mxu0 0.0
    %224 = vmatpush1.msra.mxu0 0.0
    %225 = vmatprep.subr.mxu0 0.0
    %226 = vmatpush1.msra.mxu0 0.0
    %227 = vmatprep.subr.mxu0 0.0
    %228 = vmatpush1.msra.mxu0 0.0
    %229 = vmatprep.mubr.f32.mxu0 0.0
    %v230 = vand.u32 %v26, 4294901760
    %231 = vmatmul.mubr.f32.gmra.mrb[0].mxu0 %v230
    %v232 = vpop.f32.mrb[0].mxu0
    %v233 = vadd.f32 %v117, %v232
    %v234 = vpop.f32.mrb[0].mxu0
    %235 = vmatprep.mubr.f32.mxu0 0.0
    %v236 = vand.u32 %v29, 4294901760
    %237 = vmatmul.mubr.f32.gmra.mrb[0].mxu0 %v236
    %v238 = vpop.f32.mrb[0].mxu0
    %v239 = vadd.f32 %v127, %v238
    %v240 = vpop.f32.mrb[0].mxu0
    %241 = vmatprep.mubr.f32.mxu0 0.0
    %v242 = vand.u32 %v32, 4294901760
    %243 = vmatmul.mubr.f32.gmra.mrb[0].mxu0 %v242
    %v244 = vpop.f32.mrb[0].mxu0
    %v245 = vadd.f32 %v137, %v244
    %v246 = vpop.f32.mrb[0].mxu0
    %247 = vmatprep.mubr.f32.mxu0 0.0
    %v248 = vand.u32 %v35, 4294901760
    %249 = vmatmul.mubr.f32.gmra.mrb[0].mxu0 %v248
    %v250 = vpop.f32.mrb[0].mxu0
    %v251 = vadd.f32 %v147, %v250
    %v252 = vpop.f32.mrb[0].mxu0
    %253 = vmatprep.mubr.f32.mxu0 0.0
    %v254 = vand.u32 %v38, 4294901760
    %255 = vmatmul.mubr.f32.gmra.mrb[0].mxu0 %v254
    %v256 = vpop.f32.mrb[0].mxu0
    %v257 = vadd.f32 %v157, %v256
    %v258 = vpop.f32.mrb[0].mxu0
    %259 = vdwg.mxu0
    %260 = vmatprep.subr.mxu0 0.0
    %v261 = vand.u32 %v42, 4294901760
    %v262 = vsub.f32 %v42, %v261
    %263 = vmatpush1.msra.mxu0 %v262
    %264 = vmatprep.subr.mxu0 0.0
    %265 = vmatpush1.msra.mxu0 0.0
    %266 = vmatprep.subr.mxu0 0.0
    %267 = vmatpush1.msra.mxu0 0.0
    %268 = vmatprep.subr.mxu0 0.0
    %269 = vmatpush1.msra.mxu0 0.0
    %270 = vmatprep.subr.mxu0 0.0
    %271 = vmatpush1.msra.mxu0 0.0
    %272 = vmatprep.subr.mxu0 0.0
    %273 = vmatpush1.msra.mxu0 0.0
    %274 = vmatprep.subr.mxu0 0.0
    %275 = vmatpush1.msra.mxu0 0.0
    %276 = vmatprep.subr.mxu0 0.0
    %277 = vmatpush1.msra.mxu0 0.0
    %278 = vmatprep.subr.mxu0 0.0
    %279 = vmatpush1.msra.mxu0 0.0
    %280 = vmatprep.subr.mxu0 0.0
    %281 = vmatpush1.msra.mxu0 0.0
    %282 = vmatprep.subr.mxu0 0.0
    %283 = vmatpush1.msra.mxu0 0.0
    %284 = vmatprep.subr.mxu0 0.0
    %285 = vmatpush1.msra.mxu0 0.0
    %286 = vmatprep.subr.mxu0 0.0
    %287 = vmatpush1.msra.mxu0 0.0
    %288 = vmatprep.subr.mxu0 0.0
    %289 = vmatpush1.msra.mxu0 0.0
    %290 = vmatprep.subr.mxu0 0.0
    %291 = vmatpush1.msra.mxu0 0.0
    %292 = vmatprep.subr.mxu0 0.0
    %293 = vmatpush1.msra.mxu0 0.0
    %294 = vmatprep.subr.mxu0 0.0
    %295 = vmatpush1.msra.mxu0 0.0
    %296 = vmatprep.subr.mxu0 0.0
    %297 = vmatpush1.msra.mxu0 0.0
    %298 = vmatprep.subr.mxu0 0.0
    %299 = vmatpush1.msra.mxu0 0.0
    %300 = vmatprep.subr.mxu0 0.0
    %301 = vmatpush1.msra.mxu0 0.0
    %302 = vmatprep.subr.mxu0 0.0
    %303 = vmatpush1.msra.mxu0 0.0
    %304 = vmatprep.subr.mxu0 0.0
    %305 = vmatpush1.msra.mxu0 0.0
    %306 = vmatprep.subr.mxu0 0.0
    %307 = vmatpush1.msra.mxu0 0.0
    %308 = vmatprep.subr.mxu0 0.0
    %309 = vmatpush1.msra.mxu0 0.0
    %310 = vmatprep.subr.mxu0 0.0
    %311 = vmatpush1.msra.mxu0 0.0
    %312 = vmatprep.subr.mxu0 0.0
    %313 = vmatpush1.msra.mxu0 0.0
    %314 = vmatprep.subr.mxu0 0.0
    %315 = vmatpush1.msra.mxu0 0.0
    %316 = vmatprep.subr.mxu0 0.0
    %317 = vmatpush1.msra.mxu0 0.0
    %318 = vmatprep.subr.mxu0 0.0
    %319 = vmatpush1.msra.mxu0 0.0
    %320 = vmatprep.subr.mxu0 0.0
    %321 = vmatpush1.msra.mxu0 0.0
    %322 = vmatprep.subr.mxu0 0.0
    %323 = vmatpush1.msra.mxu0 0.0
    %324 = vmatprep.subr.mxu0 0.0
    %325 = vmatpush1.msra.mxu0 0.0
    %326 = vmatprep.mubr.f32.mxu0 0.0
    %v327 = vand.u32 %v26, 4294901760
    %v328 = vsub.f32 %v26, %v327
    %329 = vmatmul.mubr.f32.gmra.mrb[0].mxu0 %v328
    %v330 = vpop.f32.mrb[0].mxu0
    %v331 = vadd.f32 %v233, %v330
    %v332 = vpop.f32.mrb[0].mxu0
    %333 = vmatprep.mubr.f32.mxu0 0.0
    %v334 = vand.u32 %v29, 4294901760
    %v335 = vsub.f32 %v29, %v334
    %336 = vmatmul.mubr.f32.gmra.mrb[0].mxu0 %v335
    %v337 = vpop.f32.mrb[0].mxu0
    %v338 = vadd.f32 %v239, %v337
    %v339 = vpop.f32.mrb[0].mxu0
    %340 = vmatprep.mubr.f32.mxu0 0.0
    %v341 = vand.u32 %v32, 4294901760
    %v342 = vsub.f32 %v32, %v341
    %343 = vmatmul.mubr.f32.gmra.mrb[0].mxu0 %v342
    %v344 = vpop.f32.mrb[0].mxu0
    %v345 = vadd.f32 %v245, %v344
    %v346 = vpop.f32.mrb[0].mxu0
    %347 = vmatprep.mubr.f32.mxu0 0.0
    %v348 = vand.u32 %v35, 4294901760
    %v349 = vsub.f32 %v35, %v348
    %350 = vmatmul.mubr.f32.gmra.mrb[0].mxu0 %v349
    %v351 = vpop.f32.mrb[0].mxu0
    %v352 = vadd.f32 %v251, %v351
    %v353 = vpop.f32.mrb[0].mxu0
    %354 = vmatprep.mubr.f32.mxu0 0.0
    %v355 = vand.u32 %v38, 4294901760
    %v356 = vsub.f32 %v38, %v355
    %357 = vmatmul.mubr.f32.gmra.mrb[0].mxu0 %v356
    %v358 = vpop.f32.mrb[0].mxu0
    %v359 = vadd.f32 %v257, %v358
    %v360 = vpop.f32.mrb[0].mxu0
    %361 = vdwg.mxu0
    %362 = vmatprep.subr.mxu0 0.0
    %v363 = vand.u32 %v42, 4294901760
    %364 = vmatpush1.msra.mxu0 %v363
    %365 = vmatprep.subr.mxu0 0.0
    %366 = vmatpush1.msra.mxu0 0.0
    %367 = vmatprep.subr.mxu0 0.0
    %368 = vmatpush1.msra.mxu0 0.0
    %369 = vmatprep.subr.mxu0 0.0
    %370 = vmatpush1.msra.mxu0 0.0
    %371 = vmatprep.subr.mxu0 0.0
    %372 = vmatpush1.msra.mxu0 0.0
    %373 = vmatprep.subr.mxu0 0.0
    %374 = vmatpush1.msra.mxu0 0.0
    %375 = vmatprep.subr.mxu0 0.0
    %376 = vmatpush1.msra.mxu0 0.0
    %377 = vmatprep.subr.mxu0 0.0
    %378 = vmatpush1.msra.mxu0 0.0
    %379 = vmatprep.subr.mxu0 0.0
    %380 = vmatpush1.msra.mxu0 0.0
    %381 = vmatprep.subr.mxu0 0.0
    %382 = vmatpush1.msra.mxu0 0.0
    %383 = vmatprep.subr.mxu0 0.0
    %384 = vmatpush1.msra.mxu0 0.0
    %385 = vmatprep.subr.mxu0 0.0
    %386 = vmatpush1.msra.mxu0 0.0
    %387 = vmatprep.subr.mxu0 0.0
    %388 = vmatpush1.msra.mxu0 0.0
    %389 = vmatprep.subr.mxu0 0.0
    %390 = vmatpush1.msra.mxu0 0.0
    %391 = vmatprep.subr.mxu0 0.0
    %392 = vmatpush1.msra.mxu0 0.0
    %393 = vmatprep.subr.mxu0 0.0
    %394 = vmatpush1.msra.mxu0 0.0
    %395 = vmatprep.subr.mxu0 0.0
    %396 = vmatpush1.msra.mxu0 0.0
    %397 = vmatprep.subr.mxu0 0.0
    %398 = vmatpush1.msra.mxu0 0.0
    %399 = vmatprep.subr.mxu0 0.0
    %400 = vmatpush1.msra.mxu0 0.0
    %401 = vmatprep.subr.mxu0 0.0
    %402 = vmatpush1.msra.mxu0 0.0
    %403 = vmatprep.subr.mxu0 0.0
    %404 = vmatpush1.msra.mxu0 0.0
    %405 = vmatprep.subr.mxu0 0.0
    %406 = vmatpush1.msra.mxu0 0.0
    %407 = vmatprep.subr.mxu0 0.0
    %408 = vmatpush1.msra.mxu0 0.0
    %409 = vmatprep.subr.mxu0 0.0
    %410 = vmatpush1.msra.mxu0 0.0
    %411 = vmatprep.subr.mxu0 0.0
    %412 = vmatpush1.msra.mxu0 0.0
    %413 = vmatprep.subr.mxu0 0.0
    %414 = vmatpush1.msra.mxu0 0.0
    %415 = vmatprep.subr.mxu0 0.0
    %416 = vmatpush1.msra.mxu0 0.0
    %417 = vmatprep.subr.mxu0 0.0
    %418 = vmatpush1.msra.mxu0 0.0
    %419 = vmatprep.subr.mxu0 0.0
    %420 = vmatpush1.msra.mxu0 0.0
    %421 = vmatprep.subr.mxu0 0.0
    %422 = vmatpush1.msra.mxu0 0.0
    %423 = vmatprep.subr.mxu0 0.0
    %424 = vmatpush1.msra.mxu0 0.0
    %425 = vmatprep.subr.mxu0 0.0
    %426 = vmatpush1.msra.mxu0 0.0
    %427 = vmatprep.mubr.f32.mxu0 0.0
    %v428 = vand.u32 %v26, 4294901760
    %v429 = vsub.f32 %v26, %v428
    %v430 = vand.u32 %v429, 4294901760
    %431 = vmatmul.mubr.f32.gmra.mrb[0].mxu0 %v430
    %v432 = vpop.f32.mrb[0].mxu0
    %v433 = vadd.f32 %v331, %v432
    %v434 = vpop.f32.mrb[0].mxu0
    %435 = vmatprep.mubr.f32.mxu0 0.0
    %v436 = vand.u32 %v29, 4294901760
    %v437 = vsub.f32 %v29, %v436
    %v438 = vand.u32 %v437, 4294901760
    %439 = vmatmul.mubr.f32.gmra.mrb[0].mxu0 %v438
    %v440 = vpop.f32.mrb[0].mxu0
    %v441 = vadd.f32 %v338, %v440
    %v442 = vpop.f32.mrb[0].mxu0
    %443 = vmatprep.mubr.f32.mxu0 0.0
    %v444 = vand.u32 %v32, 4294901760
    %v445 = vsub.f32 %v32, %v444
    %v446 = vand.u32 %v445, 4294901760
    %447 = vmatmul.mubr.f32.gmra.mrb[0].mxu0 %v446
    %v448 = vpop.f32.mrb[0].mxu0
    %v449 = vadd.f32 %v345, %v448
    %v450 = vpop.f32.mrb[0].mxu0
    %451 = vmatprep.mubr.f32.mxu0 0.0
    %v452 = vand.u32 %v35, 4294901760
    %v453 = vsub.f32 %v35, %v452
    %v454 = vand.u32 %v453, 4294901760
    %455 = vmatmul.mubr.f32.gmra.mrb[0].mxu0 %v454
    %v456 = vpop.f32.mrb[0].mxu0
    %v457 = vadd.f32 %v352, %v456
    %v458 = vpop.f32.mrb[0].mxu0
    %459 = vmatprep.mubr.f32.mxu0 0.0
    %v460 = vand.u32 %v38, 4294901760
    %v461 = vsub.f32 %v38, %v460
    %v462 = vand.u32 %v461, 4294901760
    %463 = vmatmul.mubr.f32.gmra.mrb[0].mxu0 %v462
    %v464 = vpop.f32.mrb[0].mxu0
    %v465 = vadd.f32 %v359, %v464
    %v466 = vpop.f32.mrb[0].mxu0
    %467 = vdwg.mxu0
    %468 = vmatprep.subr.mxu0 0.0
    %v469 = vand.u32 %v42, 4294901760
    %v470 = vsub.f32 %v42, %v469
    %v471 = vand.u32 %v470, 4294901760
    %472 = vmatpush1.msra.mxu0 %v471
    %473 = vmatprep.subr.mxu0 0.0
    %474 = vmatpush1.msra.mxu0 0.0
    %475 = vmatprep.subr.mxu0 0.0
    %476 = vmatpush1.msra.mxu0 0.0
    %477 = vmatprep.subr.mxu0 0.0
    %478 = vmatpush1.msra.mxu0 0.0
    %479 = vmatprep.subr.mxu0 0.0
    %480 = vmatpush1.msra.mxu0 0.0
    %481 = vmatprep.subr.mxu0 0.0
    %482 = vmatpush1.msra.mxu0 0.0
    %483 = vmatprep.subr.mxu0 0.0
    %484 = vmatpush1.msra.mxu0 0.0
    %485 = vmatprep.subr.mxu0 0.0
    %486 = vmatpush1.msra.mxu0 0.0
    %487 = vmatprep.subr.mxu0 0.0
    %488 = vmatpush1.msra.mxu0 0.0
    %489 = vmatprep.subr.mxu0 0.0
    %490 = vmatpush1.msra.mxu0 0.0
    %491 = vmatprep.subr.mxu0 0.0
    %492 = vmatpush1.msra.mxu0 0.0
    %493 = vmatprep.subr.mxu0 0.0
    %494 = vmatpush1.msra.mxu0 0.0
    %495 = vmatprep.subr.mxu0 0.0
    %496 = vmatpush1.msra.mxu0 0.0
    %497 = vmatprep.subr.mxu0 0.0
    %498 = vmatpush1.msra.mxu0 0.0
    %499 = vmatprep.subr.mxu0 0.0
    %500 = vmatpush1.msra.mxu0 0.0
    %501 = vmatprep.subr.mxu0 0.0
    %502 = vmatpush1.msra.mxu0 0.0
    %503 = vmatprep.subr.mxu0 0.0
    %504 = vmatpush1.msra.mxu0 0.0
    %505 = vmatprep.subr.mxu0 0.0
    %506 = vmatpush1.msra.mxu0 0.0
    %507 = vmatprep.subr.mxu0 0.0
    %508 = vmatpush1.msra.mxu0 0.0
    %509 = vmatprep.subr.mxu0 0.0
    %510 = vmatpush1.msra.mxu0 0.0
    %511 = vmatprep.subr.mxu0 0.0
    %512 = vmatpush1.msra.mxu0 0.0
    %513 = vmatprep.subr.mxu0 0.0
    %514 = vmatpush1.msra.mxu0 0.0
    %515 = vmatprep.subr.mxu0 0.0
    %516 = vmatpush1.msra.mxu0 0.0
    %517 = vmatprep.subr.mxu0 0.0
    %518 = vmatpush1.msra.mxu0 0.0
    %519 = vmatprep.subr.mxu0 0.0
    %520 = vmatpush1.msra.mxu0 0.0
    %521 = vmatprep.subr.mxu0 0.0
    %522 = vmatpush1.msra.mxu0 0.0
    %523 = vmatprep.subr.mxu0 0.0
    %524 = vmatpush1.msra.mxu0 0.0
    %525 = vmatprep.subr.mxu0 0.0
    %526 = vmatpush1.msra.mxu0 0.0
    %527 = vmatprep.subr.mxu0 0.0
    %528 = vmatpush1.msra.mxu0 0.0
    %529 = vmatprep.subr.mxu0 0.0
    %530 = vmatpush1.msra.mxu0 0.0
    %531 = vmatprep.subr.mxu0 0.0
    %532 = vmatpush1.msra.mxu0 0.0
    %533 = vmatprep.subr.mxu0 0.0
    %534 = vmatpush1.msra.mxu0 0.0
    %535 = vmatprep.mubr.f32.mxu0 0.0
    %v536 = vand.u32 %v26, 4294901760
    %537 = vmatmul.mubr.f32.gmra.mrb[0].mxu0 %v536
    %v538 = vpop.f32.mrb[0].mxu0
    %v539 = vadd.f32 %v433, %v538
    %v540 = vpop.f32.mrb[0].mxu0
    %541 = vmatprep.mubr.f32.mxu0 0.0
    %v542 = vand.u32 %v29, 4294901760
    %543 = vmatmul.mubr.f32.gmra.mrb[0].mxu0 %v542
    %v544 = vpop.f32.mrb[0].mxu0
    %v545 = vadd.f32 %v441, %v544
    %v546 = vpop.f32.mrb[0].mxu0
    %547 = vmatprep.mubr.f32.mxu0 0.0
    %v548 = vand.u32 %v32, 4294901760
    %549 = vmatmul.mubr.f32.gmra.mrb[0].mxu0 %v548
    %v550 = vpop.f32.mrb[0].mxu0
    %v551 = vadd.f32 %v449, %v550
    %v552 = vpop.f32.mrb[0].mxu0
    %553 = vmatprep.mubr.f32.mxu0 0.0
    %v554 = vand.u32 %v35, 4294901760
    %555 = vmatmul.mubr.f32.gmra.mrb[0].mxu0 %v554
    %v556 = vpop.f32.mrb[0].mxu0
    %v557 = vadd.f32 %v457, %v556
    %v558 = vpop.f32.mrb[0].mxu0
    %559 = vmatprep.mubr.f32.mxu0 0.0
    %v560 = vand.u32 %v38, 4294901760
    %561 = vmatmul.mubr.f32.gmra.mrb[0].mxu0 %v560
    %v562 = vpop.f32.mrb[0].mxu0
    %v563 = vadd.f32 %v465, %v562
    %v564 = vpop.f32.mrb[0].mxu0
    %565 = vdwg.mxu0
    %566 = vmatprep.subr.mxu0 0.0
    %v567 = vand.u32 %v42, 4294901760
    %568 = vmatpush1.msra.mxu0 %v567
    %569 = vmatprep.subr.mxu0 0.0
    %570 = vmatpush1.msra.mxu0 0.0
    %571 = vmatprep.subr.mxu0 0.0
    %572 = vmatpush1.msra.mxu0 0.0
    %573 = vmatprep.subr.mxu0 0.0
    %574 = vmatpush1.msra.mxu0 0.0
    %575 = vmatprep.subr.mxu0 0.0
    %576 = vmatpush1.msra.mxu0 0.0
    %577 = vmatprep.subr.mxu0 0.0
    %578 = vmatpush1.msra.mxu0 0.0
    %579 = vmatprep.subr.mxu0 0.0
    %580 = vmatpush1.msra.mxu0 0.0
    %581 = vmatprep.subr.mxu0 0.0
    %582 = vmatpush1.msra.mxu0 0.0
    %583 = vmatprep.subr.mxu0 0.0
    %584 = vmatpush1.msra.mxu0 0.0
    %585 = vmatprep.subr.mxu0 0.0
    %586 = vmatpush1.msra.mxu0 0.0
    %587 = vmatprep.subr.mxu0 0.0
    %588 = vmatpush1.msra.mxu0 0.0
    %589 = vmatprep.subr.mxu0 0.0
    %590 = vmatpush1.msra.mxu0 0.0
    %591 = vmatprep.subr.mxu0 0.0
    %592 = vmatpush1.msra.mxu0 0.0
    %593 = vmatprep.subr.mxu0 0.0
    %594 = vmatpush1.msra.mxu0 0.0
    %595 = vmatprep.subr.mxu0 0.0
    %596 = vmatpush1.msra.mxu0 0.0
    %597 = vmatprep.subr.mxu0 0.0
    %598 = vmatpush1.msra.mxu0 0.0
    %599 = vmatprep.subr.mxu0 0.0
    %600 = vmatpush1.msra.mxu0 0.0
    %601 = vmatprep.subr.mxu0 0.0
    %602 = vmatpush1.msra.mxu0 0.0
    %603 = vmatprep.subr.mxu0 0.0
    %604 = vmatpush1.msra.mxu0 0.0
    %605 = vmatprep.subr.mxu0 0.0
    %606 = vmatpush1.msra.mxu0 0.0
    %607 = vmatprep.subr.mxu0 0.0
    %608 = vmatpush1.msra.mxu0 0.0
    %609 = vmatprep.subr.mxu0 0.0
    %610 = vmatpush1.msra.mxu0 0.0
    %611 = vmatprep.subr.mxu0 0.0
    %612 = vmatpush1.msra.mxu0 0.0
    %613 = vmatprep.subr.mxu0 0.0
    %614 = vmatpush1.msra.mxu0 0.0
    %615 = vmatprep.subr.mxu0 0.0
    %616 = vmatpush1.msra.mxu0 0.0
    %617 = vmatprep.subr.mxu0 0.0
    %618 = vmatpush1.msra.mxu0 0.0
    %619 = vmatprep.subr.mxu0 0.0
    %620 = vmatpush1.msra.mxu0 0.0
    %621 = vmatprep.subr.mxu0 0.0
    %622 = vmatpush1.msra.mxu0 0.0
    %623 = vmatprep.subr.mxu0 0.0
    %624 = vmatpush1.msra.mxu0 0.0
    %625 = vmatprep.subr.mxu0 0.0
    %626 = vmatpush1.msra.mxu0 0.0
    %627 = vmatprep.subr.mxu0 0.0
    %628 = vmatpush1.msra.mxu0 0.0
    %629 = vmatprep.subr.mxu0 0.0
    %630 = vmatpush1.msra.mxu0 0.0
    %631 = vmatprep.mubr.f32.mxu0 0.0
    %v632 = vand.u32 %v26, 4294901760
    %633 = vmatmul.mubr.f32.gmra.mrb[0].mxu0 %v632
    %v634 = vpop.f32.mrb[0].mxu0
    %v635 = vadd.f32 %v539, %v634
    %v636 = vpop.f32.mrb[0].mxu0
    %637 = vmatprep.mubr.f32.mxu0 0.0
    %v638 = vand.u32 %v29, 4294901760
    %639 = vmatmul.mubr.f32.gmra.mrb[0].mxu0 %v638
    %v640 = vpop.f32.mrb[0].mxu0
    %v641 = vadd.f32 %v545, %v640
    %v642 = vpop.f32.mrb[0].mxu0
    %643 = vmatprep.mubr.f32.mxu0 0.0
    %v644 = vand.u32 %v32, 4294901760
    %645 = vmatmul.mubr.f32.gmra.mrb[0].mxu0 %v644
    %v646 = vpop.f32.mrb[0].mxu0
    %v647 = vadd.f32 %v551, %v646
    %v648 = vpop.f32.mrb[0].mxu0
    %649 = vmatprep.mubr.f32.mxu0 0.0
    %v650 = vand.u32 %v35, 4294901760
    %651 = vmatmul.mubr.f32.gmra.mrb[0].mxu0 %v650
    %v652 = vpop.f32.mrb[0].mxu0
    %v653 = vadd.f32 %v557, %v652
    %v654 = vpop.f32.mrb[0].mxu0
    %655 = vmatprep.mubr.f32.mxu0 0.0
    %v656 = vand.u32 %v38, 4294901760
    %657 = vmatmul.mubr.f32.gmra.mrb[0].mxu0 %v656
    %v658 = vpop.f32.mrb[0].mxu0
    %v659 = vadd.f32 %v563, %v658
    %v660 = vpop.f32.mrb[0].mxu0
    %661 = vdwg.mxu0
    %v662 = vld [vmem:[%s1] sm:$0xff]
    %v663 = vld [vmem:[%s1 + $0x8] sm:$0xff]
    %v664 = vld [vmem:[%s1 + $0x10] sm:$0xff]
    %v665 = vld [vmem:[%s1 + $0x18] sm:$0xff]
    %v666 = vld [vmem:[%s1 + $0x20] sm:$0x7f]
    %668 = vset.pattern.permute.xlu0 0
    %669 = vperm.xlu0 %668, %v662
    %v670 = vpop.permute.xlu0 %669
    %673 = vset.pattern.permute.xlu0 0
    %674 = vperm.xlu0 %673, %v663
    %v675 = vpop.permute.xlu0 %674
    %678 = vset.pattern.permute.xlu0 0
    %679 = vperm.xlu0 %678, %v664
    %v680 = vpop.permute.xlu0 %679
    %683 = vset.pattern.permute.xlu0 0
    %684 = vperm.xlu0 %683, %v665
    %v685 = vpop.permute.xlu0 %684
    %688 = vset.pattern.permute.xlu0 0
    %689 = vperm.xlu0 %688, %v666
    %v690 = vpop.permute.xlu0 %689
    %v692 = vadd.f32 %v670, %v635
    %v693 = vadd.f32 %v675, %v641
    %v694 = vadd.f32 %v680, %v647
    %v695 = vadd.f32 %v685, %v653
    %v696 = vadd.f32 %v690, %v659
    %v697 = vand.u32 2147483647, %v692
    %vm698 = vcmp.le.f32.partialorder %v697, 0.7853982
    %vm699 = vcmp.lt.s32.totalorder %v692, 0
    %v700 = vand.u32 %v692, 2139095040
    %v701 = vshrl.u32 %v700, 23
    %v702 = vsub.s32 %v701, 127
    %v703 = vand.u32 2147483647, %v692
    %v704 = vand.u32 %v703, 8388607
    %v705 = vor.u32 %v704, 8388608
    %v706 = vsub.s32 0, %v705
    %v707 = vadd.s32 %v702, 1
    %vm708 = vcmp.gt.s32.totalorder %v707, 0
    %v709 = vsel %vm708, %v707, 0
    %v710 = vshrl.u32 %v709, 5
    %v711 = vand.u32 %v709, 31
    %v712 = vsub.s32 32, %v711
    %v713 = vshrl.u32 683565275, %v712
    %v714 = vshll.u32 683565275, %v711
    %v715 = vshrl.u32 2475754826, %v712
    %v716 = vor.u32 %v714, %v715
    %v717 = vshll.u32 2475754826, %v711
    %v718 = vshrl.u32 2131351028, %v712
    %v719 = vor.u32 %v717, %v718
    %v720 = vshll.u32 2131351028, %v711
    %v721 = vshrl.u32 2102212464, %v712
    %v722 = vor.u32 %v720, %v721
    %v723 = vshll.u32 2102212464, %v711
    %v724 = vshrl.u32 920167782, %v712
    %v725 = vor.u32 %v723, %v724
    %v726 = vshll.u32 920167782, %v711
    %v727 = vshrl.u32 1326507024, %v712
    %v728 = vor.u32 %v726, %v727
    %vm729 = vcmp.lt.s32.totalorder %v710, 1
    %vm730 = vcmp.lt.s32.totalorder %v710, 2
    %vm731 = vcmp.lt.s32.totalorder %v710, 3
    %vm732 = vcmp.lt.s32.totalorder %v710, 4
    %v733 = vsel %vm729, %v713, %v716
    %v734 = vsel %vm732, %v722, 2102212464
    %v735 = vsel %vm731, %v719, %v734
    %v736 = vsel %vm730, %v733, %v735
    %v737 = vsel %vm729, %v716, %v719
    %v738 = vsel %vm732, %v725, 920167782
    %v739 = vsel %vm731, %v722, %v738
    %v740 = vsel %vm730, %v737, %v739
    %v741 = vsel %vm729, %v719, %v722
    %v742 = vsel %vm732, %v728, 1326507024
    %v743 = vsel %vm731, %v725, %v742
    %v744 = vsel %vm730, %v741, %v743
    %v745 = vshll.u32 %v705, 8
    %v746 = vmul.u32.u64.compose %v745, %v744
    %v747 = vextract.low.u32 %v746
    %v748 = vextract.high.u32 %v746
    %v749 = vmul.u32.u64.compose %v745, %v740
    %v750 = vextract.low.u32 %v749
    %v751 = vextract.high.u32 %v749
    %v752 = vmul.u32 %v745, %v736
    %v753 = vadd.s32 %v748, %v750
    %vm754 = vc.u32 %v748, %v750
    %v755 = vadd.s32 %v751, 1
    %v756 = vsel %vm754, %v755, %v751
    %v757 = vadd.s32 %v752, %v756
    %v758 = vadd.s32 %v757, 536870912
    %v759 = vshrl.u32 %v758, 30
    %v760 = vshll.u32 %v759, 30
    %v761 = vsub.s32 %v757, %v760
    %vm762 = vcmp.lt.s32.totalorder %v761, 0
    %v763 = vsub.s32 0, %v761
    %v764 = vsel %vm762, %v763, %v761
    %v765 = vclz %v764
    %v766 = vsub.s32 %v765, 2
    %vm767 = vcmp.gt.s32.totalorder 0, %v766
    %v768 = vsel %vm767, 0, %v766
    %v769 = vsub.s32 32, %v768
    %v770 = vshll.u32 %v761, %v768
    %v771 = vshrl.u32 %v753, %v769
    %v772 = vor.u32 %v770, %v771
    %v773 = vsub.s32 4294967266, %v768
    %v774 = vadd.s32 %v773, 127
    %v775 = vshll.u32 %v774, 23
    %v776 = vor.u32 4788187, %v775
    %v777 = vand.u32 2147483647, %v776
    %v779 = vcvt.s32.f32 %v772
    %v780 = vmul.f32 %v779, %v777
    %v781 = vxor.u32 %v780, 2147483648
    %v782 = vsel %vm699, %v781, %v780
    %v783 = vsub.s32 4, %v759
    %v784 = vsel %vm699, %v783, %v759
    %v785 = vsel %vm698, %v692, %v782
    %v786 = vsel %vm698, 0, %v784
    %v787 = vcosq.f32.pop %v785
    %v788 = vsinq.f32.pop %v785
    %vm789 = vweird.f32 %v692
    %v790 = vadd.s32 %v786, 3
    %v791 = vand.u32 %v790, 3
    %vm792 = vcmp.lt.s32.totalorder %v791, 2
    %vm793 = vcmp.eq.s32.totalorder %v791, 0
    %v794 = vxor.u32 %v788, 2147483648
    %v795 = vsel %vm793, %v787, %v794
    %vm796 = vcmp.eq.s32.totalorder %v791, 2
    %v797 = vxor.u32 %v787, 2147483648
    %v798 = vsel %vm796, %v797, %v788
    %v799 = vsel %vm792, %v795, %v798
    %v800 = vsel %vm789, nan, %v799
    %v801 = vand.u32 2147483647, %v693
    %vm802 = vcmp.le.f32.partialorder %v801, 0.7853982
    %vm803 = vcmp.lt.s32.totalorder %v693, 0
    %v804 = vand.u32 %v693, 2139095040
    %v805 = vshrl.u32 %v804, 23
    %v806 = vsub.s32 %v805, 127
    %v807 = vand.u32 2147483647, %v693
    %v808 = vand.u32 %v807, 8388607
    %v809 = vor.u32 %v808, 8388608
    %v810 = vsub.s32 0, %v809
    %v811 = vadd.s32 %v806, 1
    %vm812 = vcmp.gt.s32.totalorder %v811, 0
    %v813 = vsel %vm812, %v811, 0
    %v814 = vshrl.u32 %v813, 5
    %v815 = vand.u32 %v813, 31
    %v816 = vsub.s32 32, %v815
    %v817 = vshrl.u32 683565275, %v816
    %v818 = vshll.u32 683565275, %v815
    %v819 = vshrl.u32 2475754826, %v816
    %v820 = vor.u32 %v818, %v819
    %v821 = vshll.u32 2475754826, %v815
    %v822 = vshrl.u32 2131351028, %v816
    %v823 = vor.u32 %v821, %v822
    %v824 = vshll.u32 2131351028, %v815
    %v825 = vshrl.u32 2102212464, %v816
    %v826 = vor.u32 %v824, %v825
    %v827 = vshll.u32 2102212464, %v815
    %v828 = vshrl.u32 920167782, %v816
    %v829 = vor.u32 %v827, %v828
    %v830 = vshll.u32 920167782, %v815
    %v831 = vshrl.u32 1326507024, %v816
    %v832 = vor.u32 %v830, %v831
    %vm833 = vcmp.lt.s32.totalorder %v814, 1
    %vm834 = vcmp.lt.s32.totalorder %v814, 2
    %vm835 = vcmp.lt.s32.totalorder %v814, 3
    %vm836 = vcmp.lt.s32.totalorder %v814, 4
    %v837 = vsel %vm833, %v817, %v820
    %v838 = vsel %vm836, %v826, 2102212464
    %v839 = vsel %vm835, %v823, %v838
    %v840 = vsel %vm834, %v837, %v839
    %v841 = vsel %vm833, %v820, %v823
    %v842 = vsel %vm836, %v829, 920167782
    %v843 = vsel %vm835, %v826, %v842
    %v844 = vsel %vm834, %v841, %v843
    %v845 = vsel %vm833, %v823, %v826
    %v846 = vsel %vm836, %v832, 1326507024
    %v847 = vsel %vm835, %v829, %v846
    %v848 = vsel %vm834, %v845, %v847
    %v849 = vshll.u32 %v809, 8
    %v850 = vmul.u32.u64.compose %v849, %v848
    %v851 = vextract.low.u32 %v850
    %v852 = vextract.high.u32 %v850
    %v853 = vmul.u32.u64.compose %v849, %v844
    %v854 = vextract.low.u32 %v853
    %v855 = vextract.high.u32 %v853
    %v856 = vmul.u32 %v849, %v840
    %v857 = vadd.s32 %v852, %v854
    %vm858 = vc.u32 %v852, %v854
    %v859 = vadd.s32 %v855, 1
    %v860 = vsel %vm858, %v859, %v855
    %v861 = vadd.s32 %v856, %v860
    %v862 = vadd.s32 %v861, 536870912
    %v863 = vshrl.u32 %v862, 30
    %v864 = vshll.u32 %v863, 30
    %v865 = vsub.s32 %v861, %v864
    %vm866 = vcmp.lt.s32.totalorder %v865, 0
    %v867 = vsub.s32 0, %v865
    %v868 = vsel %vm866, %v867, %v865
    %v869 = vclz %v868
    %v870 = vsub.s32 %v869, 2
    %vm871 = vcmp.gt.s32.totalorder 0, %v870
    %v872 = vsel %vm871, 0, %v870
    %v873 = vsub.s32 32, %v872
    %v874 = vshll.u32 %v865, %v872
    %v875 = vshrl.u32 %v857, %v873
    %v876 = vor.u32 %v874, %v875
    %v877 = vsub.s32 4294967266, %v872
    %v878 = vadd.s32 %v877, 127
    %v879 = vshll.u32 %v878, 23
    %v880 = vor.u32 4788187, %v879
    %v881 = vand.u32 2147483647, %v880
    %v883 = vcvt.s32.f32 %v876
    %v884 = vmul.f32 %v883, %v881
    %v885 = vxor.u32 %v884, 2147483648
    %v886 = vsel %vm803, %v885, %v884
    %v887 = vsub.s32 4, %v863
    %v888 = vsel %vm803, %v887, %v863
    %v889 = vsel %vm802, %v693, %v886
    %v890 = vsel %vm802, 0, %v888
    %v891 = vcosq.f32.pop %v889
    %v892 = vsinq.f32.pop %v889
    %vm893 = vweird.f32 %v693
    %v894 = vadd.s32 %v890, 3
    %v895 = vand.u32 %v894, 3
    %vm896 = vcmp.lt.s32.totalorder %v895, 2
    %vm897 = vcmp.eq.s32.totalorder %v895, 0
    %v898 = vxor.u32 %v892, 2147483648
    %v899 = vsel %vm897, %v891, %v898
    %vm900 = vcmp.eq.s32.totalorder %v895, 2
    %v901 = vxor.u32 %v891, 2147483648
    %v902 = vsel %vm900, %v901, %v892
    %v903 = vsel %vm896, %v899, %v902
    %v904 = vsel %vm893, nan, %v903
    %v905 = vand.u32 2147483647, %v694
    %vm906 = vcmp.le.f32.partialorder %v905, 0.7853982
    %vm907 = vcmp.lt.s32.totalorder %v694, 0
    %v908 = vand.u32 %v694, 2139095040
    %v909 = vshrl.u32 %v908, 23
    %v910 = vsub.s32 %v909, 127
    %v911 = vand.u32 2147483647, %v694
    %v912 = vand.u32 %v911, 8388607
    %v913 = vor.u32 %v912, 8388608
    %v914 = vsub.s32 0, %v913
    %v915 = vadd.s32 %v910, 1
    %vm916 = vcmp.gt.s32.totalorder %v915, 0
    %v917 = vsel %vm916, %v915, 0
    %v918 = vshrl.u32 %v917, 5
    %v919 = vand.u32 %v917, 31
    %v920 = vsub.s32 32, %v919
    %v921 = vshrl.u32 683565275, %v920
    %v922 = vshll.u32 683565275, %v919
    %v923 = vshrl.u32 2475754826, %v920
    %v924 = vor.u32 %v922, %v923
    %v925 = vshll.u32 2475754826, %v919
    %v926 = vshrl.u32 2131351028, %v920
    %v927 = vor.u32 %v925, %v926
    %v928 = vshll.u32 2131351028, %v919
    %v929 = vshrl.u32 2102212464, %v920
    %v930 = vor.u32 %v928, %v929
    %v931 = vshll.u32 2102212464, %v919
    %v932 = vshrl.u32 920167782, %v920
    %v933 = vor.u32 %v931, %v932
    %v934 = vshll.u32 920167782, %v919
    %v935 = vshrl.u32 1326507024, %v920
    %v936 = vor.u32 %v934, %v935
    %vm937 = vcmp.lt.s32.totalorder %v918, 1
    %vm938 = vcmp.lt.s32.totalorder %v918, 2
    %vm939 = vcmp.lt.s32.totalorder %v918, 3
    %vm940 = vcmp.lt.s32.totalorder %v918, 4
    %v941 = vsel %vm937, %v921, %v924
    %v942 = vsel %vm940, %v930, 2102212464
    %v943 = vsel %vm939, %v927, %v942
    %v944 = vsel %vm938, %v941, %v943
    %v945 = vsel %vm937, %v924, %v927
    %v946 = vsel %vm940, %v933, 920167782
    %v947 = vsel %vm939, %v930, %v946
    %v948 = vsel %vm938, %v945, %v947
    %v949 = vsel %vm937, %v927, %v930
    %v950 = vsel %vm940, %v936, 1326507024
    %v951 = vsel %vm939, %v933, %v950
    %v952 = vsel %vm938, %v949, %v951
    %v953 = vshll.u32 %v913, 8
    %v954 = vmul.u32.u64.compose %v953, %v952
    %v955 = vextract.low.u32 %v954
    %v956 = vextract.high.u32 %v954
    %v957 = vmul.u32.u64.compose %v953, %v948
    %v958 = vextract.low.u32 %v957
    %v959 = vextract.high.u32 %v957
    %v960 = vmul.u32 %v953, %v944
    %v961 = vadd.s32 %v956, %v958
    %vm962 = vc.u32 %v956, %v958
    %v963 = vadd.s32 %v959, 1
    %v964 = vsel %vm962, %v963, %v959
    %v965 = vadd.s32 %v960, %v964
    %v966 = vadd.s32 %v965, 536870912
    %v967 = vshrl.u32 %v966, 30
    %v968 = vshll.u32 %v967, 30
    %v969 = vsub.s32 %v965, %v968
    %vm970 = vcmp.lt.s32.totalorder %v969, 0
    %v971 = vsub.s32 0, %v969
    %v972 = vsel %vm970, %v971, %v969
    %v973 = vclz %v972
    %v974 = vsub.s32 %v973, 2
    %vm975 = vcmp.gt.s32.totalorder 0, %v974
    %v976 = vsel %vm975, 0, %v974
    %v977 = vsub.s32 32, %v976
    %v978 = vshll.u32 %v969, %v976
    %v979 = vshrl.u32 %v961, %v977
    %v980 = vor.u32 %v978, %v979
    %v981 = vsub.s32 4294967266, %v976
    %v982 = vadd.s32 %v981, 127
    %v983 = vshll.u32 %v982, 23
    %v984 = vor.u32 4788187, %v983
    %v985 = vand.u32 2147483647, %v984
    %v987 = vcvt.s32.f32 %v980
    %v988 = vmul.f32 %v987, %v985
    %v989 = vxor.u32 %v988, 2147483648
    %v990 = vsel %vm907, %v989, %v988
    %v991 = vsub.s32 4, %v967
    %v992 = vsel %vm907, %v991, %v967
    %v993 = vsel %vm906, %v694, %v990
    %v994 = vsel %vm906, 0, %v992
    %v995 = vcosq.f32.pop %v993
    %v996 = vsinq.f32.pop %v993
    %vm997 = vweird.f32 %v694
    %v998 = vadd.s32 %v994, 3
    %v999 = vand.u32 %v998, 3
    %vm1000 = vcmp.lt.s32.totalorder %v999, 2
    %vm1001 = vcmp.eq.s32.totalorder %v999, 0
    %v1002 = vxor.u32 %v996, 2147483648
    %v1003 = vsel %vm1001, %v995, %v1002
    %vm1004 = vcmp.eq.s32.totalorder %v999, 2
    %v1005 = vxor.u32 %v995, 2147483648
    %v1006 = vsel %vm1004, %v1005, %v996
    %v1007 = vsel %vm1000, %v1003, %v1006
    %v1008 = vsel %vm997, nan, %v1007
    %v1009 = vand.u32 2147483647, %v695
    %vm1010 = vcmp.le.f32.partialorder %v1009, 0.7853982
    %vm1011 = vcmp.lt.s32.totalorder %v695, 0
    %v1012 = vand.u32 %v695, 2139095040
    %v1013 = vshrl.u32 %v1012, 23
    %v1014 = vsub.s32 %v1013, 127
    %v1015 = vand.u32 2147483647, %v695
    %v1016 = vand.u32 %v1015, 8388607
    %v1017 = vor.u32 %v1016, 8388608
    %v1018 = vsub.s32 0, %v1017
    %v1019 = vadd.s32 %v1014, 1
    %vm1020 = vcmp.gt.s32.totalorder %v1019, 0
    %v1021 = vsel %vm1020, %v1019, 0
    %v1022 = vshrl.u32 %v1021, 5
    %v1023 = vand.u32 %v1021, 31
    %v1024 = vsub.s32 32, %v1023
    %v1025 = vshrl.u32 683565275, %v1024
    %v1026 = vshll.u32 683565275, %v1023
    %v1027 = vshrl.u32 2475754826, %v1024
    %v1028 = vor.u32 %v1026, %v1027
    %v1029 = vshll.u32 2475754826, %v1023
    %v1030 = vshrl.u32 2131351028, %v1024
    %v1031 = vor.u32 %v1029, %v1030
    %v1032 = vshll.u32 2131351028, %v1023
    %v1033 = vshrl.u32 2102212464, %v1024
    %v1034 = vor.u32 %v1032, %v1033
    %v1035 = vshll.u32 2102212464, %v1023
    %v1036 = vshrl.u32 920167782, %v1024
    %v1037 = vor.u32 %v1035, %v1036
    %v1038 = vshll.u32 920167782, %v1023
    %v1039 = vshrl.u32 1326507024, %v1024
    %v1040 = vor.u32 %v1038, %v1039
    %vm1041 = vcmp.lt.s32.totalorder %v1022, 1
    %vm1042 = vcmp.lt.s32.totalorder %v1022, 2
    %vm1043 = vcmp.lt.s32.totalorder %v1022, 3
    %vm1044 = vcmp.lt.s32.totalorder %v1022, 4
    %v1045 = vsel %vm1041, %v1025, %v1028
    %v1046 = vsel %vm1044, %v1034, 2102212464
    %v1047 = vsel %vm1043, %v1031, %v1046
    %v1048 = vsel %vm1042, %v1045, %v1047
    %v1049 = vsel %vm1041, %v1028, %v1031
    %v1050 = vsel %vm1044, %v1037, 920167782
    %v1051 = vsel %vm1043, %v1034, %v1050
    %v1052 = vsel %vm1042, %v1049, %v1051
    %v1053 = vsel %vm1041, %v1031, %v1034
    %v1054 = vsel %vm1044, %v1040, 1326507024
    %v1055 = vsel %vm1043, %v1037, %v1054
    %v1056 = vsel %vm1042, %v1053, %v1055
    %v1057 = vshll.u32 %v1017, 8
    %v1058 = vmul.u32.u64.compose %v1057, %v1056
    %v1059 = vextract.low.u32 %v1058
    %v1060 = vextract.high.u32 %v1058
    %v1061 = vmul.u32.u64.compose %v1057, %v1052
    %v1062 = vextract.low.u32 %v1061
    %v1063 = vextract.high.u32 %v1061
    %v1064 = vmul.u32 %v1057, %v1048
    %v1065 = vadd.s32 %v1060, %v1062
    %vm1066 = vc.u32 %v1060, %v1062
    %v1067 = vadd.s32 %v1063, 1
    %v1068 = vsel %vm1066, %v1067, %v1063
    %v1069 = vadd.s32 %v1064, %v1068
    %v1070 = vadd.s32 %v1069, 536870912
    %v1071 = vshrl.u32 %v1070, 30
    %v1072 = vshll.u32 %v1071, 30
    %v1073 = vsub.s32 %v1069, %v1072
    %vm1074 = vcmp.lt.s32.totalorder %v1073, 0
    %v1075 = vsub.s32 0, %v1073
    %v1076 = vsel %vm1074, %v1075, %v1073
    %v1077 = vclz %v1076
    %v1078 = vsub.s32 %v1077, 2
    %vm1079 = vcmp.gt.s32.totalorder 0, %v1078
    %v1080 = vsel %vm1079, 0, %v1078
    %v1081 = vsub.s32 32, %v1080
    %v1082 = vshll.u32 %v1073, %v1080
    %v1083 = vshrl.u32 %v1065, %v1081
    %v1084 = vor.u32 %v1082, %v1083
    %v1085 = vsub.s32 4294967266, %v1080
    %v1086 = vadd.s32 %v1085, 127
    %v1087 = vshll.u32 %v1086, 23
    %v1088 = vor.u32 4788187, %v1087
    %v1089 = vand.u32 2147483647, %v1088
    %v1091 = vcvt.s32.f32 %v1084
    %v1092 = vmul.f32 %v1091, %v1089
    %v1093 = vxor.u32 %v1092, 2147483648
    %v1094 = vsel %vm1011, %v1093, %v1092
    %v1095 = vsub.s32 4, %v1071
    %v1096 = vsel %vm1011, %v1095, %v1071
    %v1097 = vsel %vm1010, %v695, %v1094
    %v1098 = vsel %vm1010, 0, %v1096
    %v1099 = vcosq.f32.pop %v1097
    %v1100 = vsinq.f32.pop %v1097
    %vm1101 = vweird.f32 %v695
    %v1102 = vadd.s32 %v1098, 3
    %v1103 = vand.u32 %v1102, 3
    %vm1104 = vcmp.lt.s32.totalorder %v1103, 2
    %vm1105 = vcmp.eq.s32.totalorder %v1103, 0
    %v1106 = vxor.u32 %v1100, 2147483648
    %v1107 = vsel %vm1105, %v1099, %v1106
    %vm1108 = vcmp.eq.s32.totalorder %v1103, 2
    %v1109 = vxor.u32 %v1099, 2147483648
    %v1110 = vsel %vm1108, %v1109, %v1100
    %v1111 = vsel %vm1104, %v1107, %v1110
    %v1112 = vsel %vm1101, nan, %v1111
    %v1113 = vand.u32 2147483647, %v696
    %vm1114 = vcmp.le.f32.partialorder %v1113, 0.7853982
    %vm1115 = vcmp.lt.s32.totalorder %v696, 0
    %v1116 = vand.u32 %v696, 2139095040
    %v1117 = vshrl.u32 %v1116, 23
    %v1118 = vsub.s32 %v1117, 127
    %v1119 = vand.u32 2147483647, %v696
    %v1120 = vand.u32 %v1119, 8388607
    %v1121 = vor.u32 %v1120, 8388608
    %v1122 = vsub.s32 0, %v1121
    %v1123 = vadd.s32 %v1118, 1
    %vm1124 = vcmp.gt.s32.totalorder %v1123, 0
    %v1125 = vsel %vm1124, %v1123, 0
    %v1126 = vshrl.u32 %v1125, 5
    %v1127 = vand.u32 %v1125, 31
    %v1128 = vsub.s32 32, %v1127
    %v1129 = vshrl.u32 683565275, %v1128
    %v1130 = vshll.u32 683565275, %v1127
    %v1131 = vshrl.u32 2475754826, %v1128
    %v1132 = vor.u32 %v1130, %v1131
    %v1133 = vshll.u32 2475754826, %v1127
    %v1134 = vshrl.u32 2131351028, %v1128
    %v1135 = vor.u32 %v1133, %v1134
    %v1136 = vshll.u32 2131351028, %v1127
    %v1137 = vshrl.u32 2102212464, %v1128
    %v1138 = vor.u32 %v1136, %v1137
    %v1139 = vshll.u32 2102212464, %v1127
    %v1140 = vshrl.u32 920167782, %v1128
    %v1141 = vor.u32 %v1139, %v1140
    %v1142 = vshll.u32 920167782, %v1127
    %v1143 = vshrl.u32 1326507024, %v1128
    %v1144 = vor.u32 %v1142, %v1143
    %vm1145 = vcmp.lt.s32.totalorder %v1126, 1
    %vm1146 = vcmp.lt.s32.totalorder %v1126, 2
    %vm1147 = vcmp.lt.s32.totalorder %v1126, 3
    %vm1148 = vcmp.lt.s32.totalorder %v1126, 4
    %v1149 = vsel %vm1145, %v1129, %v1132
    %v1150 = vsel %vm1148, %v1138, 2102212464
    %v1151 = vsel %vm1147, %v1135, %v1150
    %v1152 = vsel %vm1146, %v1149, %v1151
    %v1153 = vsel %vm1145, %v1132, %v1135
    %v1154 = vsel %vm1148, %v1141, 920167782
    %v1155 = vsel %vm1147, %v1138, %v1154
    %v1156 = vsel %vm1146, %v1153, %v1155
    %v1157 = vsel %vm1145, %v1135, %v1138
    %v1158 = vsel %vm1148, %v1144, 1326507024
    %v1159 = vsel %vm1147, %v1141, %v1158
    %v1160 = vsel %vm1146, %v1157, %v1159
    %v1161 = vshll.u32 %v1121, 8
    %v1162 = vmul.u32.u64.compose %v1161, %v1160
    %v1163 = vextract.low.u32 %v1162
    %v1164 = vextract.high.u32 %v1162
    %v1165 = vmul.u32.u64.compose %v1161, %v1156
    %v1166 = vextract.low.u32 %v1165
    %v1167 = vextract.high.u32 %v1165
    %v1168 = vmul.u32 %v1161, %v1152
    %v1169 = vadd.s32 %v1164, %v1166
    %vm1170 = vc.u32 %v1164, %v1166
    %v1171 = vadd.s32 %v1167, 1
    %v1172 = vsel %vm1170, %v1171, %v1167
    %v1173 = vadd.s32 %v1168, %v1172
    %v1174 = vadd.s32 %v1173, 536870912
    %v1175 = vshrl.u32 %v1174, 30
    %v1176 = vshll.u32 %v1175, 30
    %v1177 = vsub.s32 %v1173, %v1176
    %vm1178 = vcmp.lt.s32.totalorder %v1177, 0
    %v1179 = vsub.s32 0, %v1177
    %v1180 = vsel %vm1178, %v1179, %v1177
    %v1181 = vclz %v1180
    %v1182 = vsub.s32 %v1181, 2
    %vm1183 = vcmp.gt.s32.totalorder 0, %v1182
    %v1184 = vsel %vm1183, 0, %v1182
    %v1185 = vsub.s32 32, %v1184
    %v1186 = vshll.u32 %v1177, %v1184
    %v1187 = vshrl.u32 %v1169, %v1185
    %v1188 = vor.u32 %v1186, %v1187
    %v1189 = vsub.s32 4294967266, %v1184
    %v1190 = vadd.s32 %v1189, 127
    %v1191 = vshll.u32 %v1190, 23
    %v1192 = vor.u32 4788187, %v1191
    %v1193 = vand.u32 2147483647, %v1192
    %v1195 = vcvt.s32.f32 %v1188
    %v1196 = vmul.f32 %v1195, %v1193
    %v1197 = vxor.u32 %v1196, 2147483648
    %v1198 = vsel %vm1115, %v1197, %v1196
    %v1199 = vsub.s32 4, %v1175
    %v1200 = vsel %vm1115, %v1199, %v1175
    %v1201 = vsel %vm1114, %v696, %v1198
    %v1202 = vsel %vm1114, 0, %v1200
    %v1203 = vcosq.f32.pop %v1201
    %v1204 = vsinq.f32.pop %v1201
    %vm1205 = vweird.f32 %v696
    %v1206 = vadd.s32 %v1202, 3
    %v1207 = vand.u32 %v1206, 3
    %vm1208 = vcmp.lt.s32.totalorder %v1207, 2
    %vm1209 = vcmp.eq.s32.totalorder %v1207, 0
    %v1210 = vxor.u32 %v1204, 2147483648
    %v1211 = vsel %vm1209, %v1203, %v1210
    %vm1212 = vcmp.eq.s32.totalorder %v1207, 2
    %v1213 = vxor.u32 %v1203, 2147483648
    %v1214 = vsel %vm1212, %v1213, %v1204
    %v1215 = vsel %vm1208, %v1211, %v1214
    %v1216 = vsel %vm1205, nan, %v1215
    %v1217 = vld [vmem:[%s2] sm:$0xff]
    %v1218 = vld [vmem:[%s2 + $0x8] sm:$0xff]
    %v1219 = vld [vmem:[%s2 + $0x10] sm:$0xff]
    %v1220 = vld [vmem:[%s2 + $0x18] sm:$0xff]
    %v1221 = vld [vmem:[%s2 + $0x20] sm:$0x7f]
    %vm1222 = vcmp.gt.f32.partialorder %v1217, 0.5
    %vm1223 = vcmp.gt.f32.partialorder %v1218, 0.5
    %vm1224 = vcmp.gt.f32.partialorder %v1219, 0.5
    %vm1225 = vcmp.gt.f32.partialorder %v1220, 0.5
    %vm1226 = vcmp.gt.f32.partialorder %v1221, 0.5
    %v1227 = vsel %vm1222, 1, 0
    %v1228 = vsel %vm1223, 1, 0
    %v1229 = vsel %vm1224, 1, 0
    %v1230 = vsel %vm1225, 1, 0
    %v1231 = vsel %vm1226, 1, 0
    %1232 = vset.pattern.permute.xlu0 0
    %1233 = vperm.xlu0 %1232, %v1227
    %v1234 = vpop.permute.xlu0 %1233
    %1235 = vset.pattern.permute.xlu0 0
    %1236 = vperm.xlu0 %1235, %v1228
    %v1237 = vpop.permute.xlu0 %1236
    %1238 = vset.pattern.permute.xlu0 0
    %1239 = vperm.xlu0 %1238, %v1229
    %v1240 = vpop.permute.xlu0 %1239
    %1241 = vset.pattern.permute.xlu0 0
    %1242 = vperm.xlu0 %1241, %v1230
    %v1243 = vpop.permute.xlu0 %1242
    %1244 = vset.pattern.permute.xlu0 0
    %1245 = vperm.xlu0 %1244, %v1231
    %v1246 = vpop.permute.xlu0 %1245
    %vm1247 = vcmp.eq.s32.totalorder %v1234, 1
    %vm1248 = vcmp.eq.s32.totalorder %v1237, 1
    %vm1249 = vcmp.eq.s32.totalorder %v1240, 1
    %vm1250 = vcmp.eq.s32.totalorder %v1243, 1
    %vm1251 = vcmp.eq.s32.totalorder %v1246, 1
    %v1252 = vsel %vm1247, %v635, %v800
    %v1253 = vsel %vm1248, %v641, %v904
    %v1254 = vsel %vm1249, %v647, %v1008
    %v1255 = vsel %vm1250, %v653, %v1112
    %v1256 = vsel %vm1251, %v659, %v1216
    %1257 = vst [vmem:[#allocation2] sm:$0xff] %v1252
    %1258 = vst [vmem:[#allocation2 + $0x8] sm:$0xff] %v1253
    %1259 = vst [vmem:[#allocation2 + $0x10] sm:$0xff] %v1254
    %1260 = vst [vmem:[#allocation2 + $0x18] sm:$0xff] %v1255
    %1261 = vst [vmem:[#allocation2 + $0x20] sm:$0x7f] %v1256
    // Predicated region
    $region18: #{tpu_custom_call.1} parent=1 // pred_check
      _
    $region19: #{tpu_custom_call.1} parent=1 // pred_check_branch
      %1263 = sbr.rel (0) target = $region21
    $region20: #{tpu_custom_call.1} parent=1 // pred_region
      %s1265 = ssub.s32 640, 640
      %1266 = vsyncadd [#allocation3], %s1265
      %s1267 = sshll.u32 [#allocation2], 4
      %s1268 = int_to_ptr.vmem [resolvable:$true] %s1267
      %1273 = dma.vmem_to_hbm [thread:$0]  %s1268, 640, %s4, [#allocation3], 128, 128, 8
    $region21: #{tpu_custom_call.1} parent=1 // pred_fallthru
      _
    // Predicated region
    $region22: #{tpu_custom_call.1} parent=1 // pred_check
      _
    $region23: #{tpu_custom_call.1} parent=1 // pred_check_branch
      %1275 = sbr.rel (0) target = $region25
    $region24: #{tpu_custom_call.1} parent=1 // pred_region
      %1276 = dma.done [#allocation3], 640
    $region25: #{tpu_custom_call.1} parent=1 // pred_fallthru
      _
    %1277 = vsyncpa [#allocation3], 1

</llo_original>
